<compile_context>
chip_gen: v7x
topology: tpu7x:2x2x1
jax: 0.10.0
libtpu: 0.0.40
codegen_flags: <defaults>
</compile_context>

<pallas_src>
import functools

import jax
import jax.numpy as jnp
from jax import lax
from jax.experimental import pallas as pl
from jax.experimental.pallas import tpu as pltpu

THRESHOLD = 0.7
EPS = 1e-8           # nn.CosineSimilarity default eps
_LANES = 128
_DIVISORS_128 = (1, 2, 4, 8, 16, 32, 64, 128)


def _cosine_loss_kernel(*refs, groups, total_rows, threshold, eps):
    """One row-tile: per-row cosine distance -> threshold -> partial sum."""
    if groups > 1:
        pred_ref, target_ref, sel_ref, partial_ref = refs
    else:
        pred_ref, target_ref, partial_ref = refs
        sel_ref = None

    p = pred_ref[...].astype(jnp.float32)      # (TB, W)
    t = target_ref[...].astype(jnp.float32)

    pt = p * t
    pp = p * p
    tt = t * t

    if groups == 1:
        # Feature dim maps directly to lanes: reduce along lanes.
        dot = jnp.sum(pt, axis=1, keepdims=True)              # (TB, 1)
        sp = jnp.sum(pp, axis=1, keepdims=True)
        st = jnp.sum(tt, axis=1, keepdims=True)
    else:
        # Lane-packed layout: each VMEM row holds `groups` original rows.
        # Per-original-row sums via a resident block-diagonal selector matmul
        # on the (otherwise idle) MXU.
        sel = sel_ref[...]                                      # (W, groups) f32
        dot = jnp.dot(pt, sel, preferred_element_type=jnp.float32)  # (TB, G)
        sp = jnp.dot(pp, sel, preferred_element_type=jnp.float32)
        st = jnp.dot(tt, sel, preferred_element_type=jnp.float32)

    # PyTorch clamp:  cos = dot / max(||p||*||t||, eps)
    #              == dot * rsqrt(max(sp*st, eps^2))      (rsqrt -> EUP slot)
    inv_norm = lax.rsqrt(jnp.maximum(sp * st, eps * eps))
    dist = 1.0 - dot * inv_norm
    dist = jnp.where(dist < threshold, 0.0, dist)

    # Mask padded / out-of-range original rows (batch padding, D padding is
    # already harmless since zero lanes add 0; ragged last tiles are garbage
    # and get killed here too).
    tb = dist.shape[0]
    local = lax.broadcasted_iota(jnp.int32, dist.shape, 0)     # packed row in tile
    grp_i = lax.broadcasted_iota(jnp.int32, dist.shape, 1)     # group within row
    row = (pl.program_id(0) * tb + local) * groups + grp_i     # original row id
    dist = jnp.where(row < total_rows, dist, 0.0)

    partial_ref[...] = jnp.full(partial_ref.shape, jnp.sum(dist), jnp.float32)


def _vmem_limits():
    """(scoped vmem limit to request, tile-sizing budget) in bytes.

    v7x physically has only 64 MiB VMEM per TensorCore -> keep the scoped
    limit well under it; v5e/v6e have 128 MiB so 64 MiB scoped is fine.
    """
    phys = 128 * 1024 * 1024
    try:
        phys = int(pltpu.get_tpu_info().vmem_capacity_bytes)
    except Exception:
        pass
    if phys <= 64 * 1024 * 1024:          # v7x-class
        limit = 44 * 1024 * 1024
    else:                                  # v5e / v6e
        limit = 64 * 1024 * 1024
    return limit, int(limit * 0.75)


def _choose_row_tile(rows, width, itemsize, sublane, vmem_budget):
    """Rows per tile: as big as the VMEM budget allows (mem-bound op)."""
    lane_w = ((width + _LANES - 1) // _LANES) * _LANES     # lane-padded width
    # Per packed-row VMEM bytes:
    #   2 inputs x 2 pipeline buffers of the (possibly sub-32-bit) block,
    #   plus ~5 f32-width temporaries (f32 casts of p/t + pt/pp/tt).
    bytes_per_row = lane_w * (2 * 2 * itemsize + 5 * 4)
    tb = vmem_budget // bytes_per_row
    # A single input block beyond ~8 MiB has diminishing returns.
    tb = min(tb, (8 * 1024 * 1024) // (lane_w * itemsize))
    tb = max(sublane, (tb // sublane) * sublane)
    return tb


def cosine_similarity_loss(pred, target, *, threshold=THRESHOLD, eps=EPS,
                           row_tile=None):
    """loss = mean(threshold(1 - cosine_similarity(pred, target, dim=1)))."""
    assert pred.shape == target.shape and pred.ndim == 2
    b, d = pred.shape
    itemsize = jnp.dtype(pred.dtype).itemsize
    sublane = max(8, 8 * (4 // itemsize))      # 8 f32 / 16 bf16 / 32 int8

    # --- Lane-dense packing for narrow D (pad D up to a divisor of 128). ---
    if d <= _LANES:
        d_pad = next(v for v in _DIVISORS_128 if v >= d)
        groups = _LANES // d_pad
    else:
        d_pad = d
        groups = 1

    if groups > 1:
        b_pad = ((b + groups - 1) // groups) * groups
        if d_pad != d or b_pad != b:
            pred = jnp.pad(pred, ((0, b_pad - b), (0, d_pad - d)))
            target = jnp.pad(target, ((0, b_pad - b), (0, d_pad - d)))
        rows, width = b_pad // groups, _LANES
    else:
        rows, width = b, d

    pred_p = pred.reshape(rows, width)
    target_p = target.reshape(rows, width)

    vmem_limit, vmem_budget = _vmem_limits()

    if row_tile is not None:
        tb = row_tile
    else:
        tb = _choose_row_tile(rows, width, itemsize, sublane, vmem_budget)
        if tb >= rows:
            # Everything fits in one tile: still split into 2 grid steps when
            # legal so both v7x TensorCores get work on the parallel axis.
            if rows >= 2 * sublane:
                half = (rows + 1) // 2
                tb = ((half + sublane - 1) // sublane) * sublane
            else:
                tb = rows
    num_tiles = pl.cdiv(rows, tb)

    kernel = functools.partial(
        _cosine_loss_kernel,
        groups=groups, total_rows=b,
        threshold=float(threshold), eps=float(eps),
    )

    in_specs = [
        pl.BlockSpec((tb, width), lambda i: (i, 0)),
        pl.BlockSpec((tb, width), lambda i: (i, 0)),
    ]
    args = [pred_p, target_p]
    sel_bytes = 0
    if groups > 1:
        # Block-diagonal selector (W x groups), built once, stays resident.
        lane_grp = jnp.arange(width, dtype=jnp.int32) // d_pad
        sel = (lane_grp[:, None] == jnp.arange(groups, dtype=jnp.int32)[None, :]
               ).astype(jnp.float32)
        in_specs.append(pl.BlockSpec((width, groups), lambda i: (0, 0)))
        args.append(sel)
        sel_bytes = width * groups * 4

    cost = pl.CostEstimate(
        flops=int(8 * b * d),
        transcendentals=int(b),
        bytes_accessed=int(2 * rows * width * itemsize
                           + num_tiles * _LANES * 4 + sel_bytes),
    )

    partials = pl.pallas_call(
        kernel,
        grid=(num_tiles,),
        in_specs=in_specs,
        out_specs=pl.BlockSpec((1, 1, _LANES), lambda i: (i, 0, 0)),
        out_shape=jax.ShapeDtypeStruct((num_tiles, 1, _LANES), jnp.float32),
        compiler_params=pltpu.CompilerParams(
            dimension_semantics=("parallel",),
            vmem_limit_bytes=vmem_limit,
        ),
        cost_estimate=cost,
    )(*args)

    # Tiny finish in plain JAX: sum per-tile partials, divide by the true B.
    return jnp.sum(partials[:, 0, 0]) / b


def _reference(pred, target, threshold=THRESHOLD, eps=EPS):
    p = pred.astype(jnp.float32)
    t = target.astype(jnp.float32)
    dot = jnp.sum(p * t, axis=1)
    denom = jnp.sqrt(jnp.maximum(jnp.sum(p * p, 1) * jnp.sum(t * t, 1),
                                 eps * eps))
    dist = 1.0 - dot / denom
    dist = jnp.where(dist < threshold, 0.0, dist)
    return jnp.mean(dist)


if __name__ == "__main__":
    key = jax.random.PRNGKey(0)

    # 1) Small D (divisor of 128) -> lane-packed path, single tile.
    k1, k2 = jax.random.split(key)
    pred = jax.random.normal(k1, (8, 32), dtype=jnp.float32)
    target = jax.random.normal(k2, (8, 32), dtype=jnp.float32)
    loss = jax.block_until_ready(cosine_similarity_loss(pred, target))
    ref = _reference(pred, target)
    assert jnp.allclose(loss, ref, atol=1e-5, rtol=1e-5), (loss, ref)

    # 2) D == 128 -> lanes carry D directly; exercises the >=2-tile split.
    k3, k4 = jax.random.split(k2)
    pred2 = jax.random.normal(k3, (16, 128), dtype=jnp.float32)
    target2 = jax.random.normal(k4, (16, 128), dtype=jnp.float32)
    loss2 = jax.block_until_ready(cosine_similarity_loss(pred2, target2))
    ref2 = _reference(pred2, target2)
    assert jnp.allclose(loss2, ref2, atol=1e-5, rtol=1e-5), (loss2, ref2)

    # 3) Multi-tile grid with a ragged tail tile + an all-zero row (eps path).
    k5, k6 = jax.random.split(k4)
    pred3 = jax.random.normal(k5, (72, 32), dtype=jnp.float32).at[0].set(0.0)
    target3 = jax.random.normal(k6, (72, 32), dtype=jnp.float32)
    loss3 = jax.block_until_ready(
        cosine_similarity_loss(pred3, target3, row_tile=8))
    ref3 = _reference(pred3, target3)
    assert jnp.allclose(loss3, ref3, atol=1e-5, rtol=1e-5), (loss3, ref3)

    # 4) bf16 with a non-divisor D (48 -> padded to 64, groups=2).
    k7, k8 = jax.random.split(k6)
    pred4 = jax.random.normal(k7, (10, 48), dtype=jnp.bfloat16)
    target4 = jax.random.normal(k8, (10, 48), dtype=jnp.bfloat16)
    loss4 = jax.block_until_ready(cosine_similarity_loss(pred4, target4))
    ref4 = _reference(pred4, target4)
    assert jnp.allclose(loss4, ref4, atol=1e-5, rtol=1e-5), (loss4, ref4)

    print("KERNEL_OK")
</pallas_src>

<mosaic_0001>
module attributes {stable_mosaic.version = 11 : i64} {
  func.func @_cosine_loss_kernel(%arg0: i32, %arg1: memref<2x128xf32, #tpu.memory_space<vmem>>, %arg2: memref<2x128xf32, #tpu.memory_space<vmem>>, %arg3: memref<128x4xf32, #tpu.memory_space<vmem>>, %arg4: memref<1x1x128xf32, #tpu.memory_space<vmem>>) attributes {dimension_semantics = [#tpu.dimension_semantics<parallel>], iteration_bounds = array<i64: 1>, scalar_prefetch = 0 : i64, scratch_operands = 0 : i64, tpu.core_type = #tpu.core_type<tc>, window_params = [{transform_indices = @transform_0, window_bounds = array<i64: 2, 128>}, {transform_indices = @transform_1, window_bounds = array<i64: 2, 128>}, {pipeline_mode = #tpu.pipeline_mode<synchronous>, transform_indices = @transform_2, window_bounds = array<i64: 128, 4>}, {transform_indices = @transform_3, window_bounds = array<i64: 1, 1, 128>}]} {
    %c0 = arith.constant 0 : index
    %c0_0 = arith.constant 0 : index
    %0 = vector.load %arg1[%c0, %c0_0] : memref<2x128xf32, #tpu.memory_space<vmem>>, vector<2x128xf32>
    %c0_1 = arith.constant 0 : index
    %c0_2 = arith.constant 0 : index
    %1 = vector.load %arg2[%c0_1, %c0_2] : memref<2x128xf32, #tpu.memory_space<vmem>>, vector<2x128xf32>
    %2 = arith.mulf %0, %1 : vector<2x128xf32>
    %3 = arith.mulf %0, %0 : vector<2x128xf32>
    %4 = arith.mulf %1, %1 : vector<2x128xf32>
    %c0_3 = arith.constant 0 : index
    %c0_4 = arith.constant 0 : index
    %5 = vector.load %arg3[%c0_3, %c0_4] : memref<128x4xf32, #tpu.memory_space<vmem>>, vector<128x4xf32>
    %cst = arith.constant dense<0.000000e+00> : vector<2x4xf32>
    %6 = tpu.matmul %2, %5, %cst {dimension_numbers = #tpu.dot_dimension_numbers<[1], [0], [0], [1], [0, 0, 1, 1], [], []>} : vector<2x128xf32>, vector<128x4xf32>, vector<2x4xf32> -> vector<2x4xf32>
    %cst_5 = arith.constant dense<0.000000e+00> : vector<2x4xf32>
    %7 = tpu.matmul %3, %5, %cst_5 {dimension_numbers = #tpu.dot_dimension_numbers<[1], [0], [0], [1], [0, 0, 1, 1], [], []>} : vector<2x128xf32>, vector<128x4xf32>, vector<2x4xf32> -> vector<2x4xf32>
    %cst_6 = arith.constant dense<0.000000e+00> : vector<2x4xf32>
    %8 = tpu.matmul %4, %5, %cst_6 {dimension_numbers = #tpu.dot_dimension_numbers<[1], [0], [0], [1], [0, 0, 1, 1], [], []>} : vector<2x128xf32>, vector<128x4xf32>, vector<2x4xf32> -> vector<2x4xf32>
    %9 = arith.mulf %7, %8 : vector<2x4xf32>
    %cst_7 = arith.constant 1.000000e-16 : f32
    %10 = vector.broadcast %cst_7 : f32 to vector<2x4xf32>
    %11 = arith.maximumf %9, %10 : vector<2x4xf32>
    %12 = math.rsqrt %11 : vector<2x4xf32>
    %13 = arith.mulf %6, %12 : vector<2x4xf32>
    %cst_8 = arith.constant 1.000000e+00 : f32
    %14 = vector.broadcast %cst_8 : f32 to vector<2x4xf32>
    %15 = arith.subf %14, %13 : vector<2x4xf32>
    %cst_9 = arith.constant 0.699999988 : f32
    %16 = vector.broadcast %cst_9 : f32 to vector<2x4xf32>
    %17 = arith.cmpf olt, %15, %16 : vector<2x4xf32>
    %cst_10 = arith.constant 0.000000e+00 : f32
    %18 = vector.broadcast %cst_10 : f32 to vector<2x4xf32>
    %19 = arith.select %17, %18, %15 : vector<2x4xi1>, vector<2x4xf32>
    %20 = tpu.iota {dimensions = array<i32: 0>} : vector<2x4xi32>
    %21 = tpu.iota {dimensions = array<i32: 1>} : vector<2x4xi32>
    %c2_i32 = arith.constant 2 : i32
    %22 = arith.muli %arg0, %c2_i32 : i32
    %23 = vector.broadcast %22 : i32 to vector<2x4xi32>
    %24 = arith.addi %23, %20 : vector<2x4xi32>
    %c4_i32 = arith.constant 4 : i32
    %25 = vector.broadcast %c4_i32 : i32 to vector<2x4xi32>
    %26 = arith.muli %24, %25 : vector<2x4xi32>
    %27 = arith.addi %26, %21 : vector<2x4xi32>
    %c8_i32 = arith.constant 8 : i32
    %28 = vector.broadcast %c8_i32 : i32 to vector<2x4xi32>
    %29 = arith.cmpi slt, %27, %28 : vector<2x4xi32>
    %cst_11 = arith.constant 0.000000e+00 : f32
    %30 = vector.broadcast %cst_11 : f32 to vector<2x4xf32>
    %31 = arith.select %29, %19, %30 : vector<2x4xi1>, vector<2x4xf32>
    %32 = vector.shape_cast %31 : vector<2x4xf32> to vector<1x2x4xf32>
    %cst_12 = arith.constant dense<0.000000e+00> : vector<1xf32>
    %33 = vector.multi_reduction <add>, %32, %cst_12 [1, 2] : vector<1x2x4xf32> to vector<1xf32>
    %34 = vector.shape_cast %33 : vector<1xf32> to vector<1x1x1xf32>
    %35 = vector.extract %34[0, 0, 0] : f32 from vector<1x1x1xf32>
    %36 = vector.broadcast %35 : f32 to vector<1x1x128xf32>
    %c0_13 = arith.constant 0 : index
    %c0_14 = arith.constant 0 : index
    %c0_15 = arith.constant 0 : index
    %37 = vector.load %arg4[%c0_13, %c0_14, %c0_15] : memref<1x1x128xf32, #tpu.memory_space<vmem>>, vector<1x1x128xf32>
    tpu.vector_store %arg4[%c0_13, %c0_14, %c0_15], %36 {strides = array<i32>} : memref<1x1x128xf32, #tpu.memory_space<vmem>>, vector<1x1x128xf32>,
    return
  }
  func.func @transform_0(%arg0: i32) -> (i32, i32) {
    %c0_i32 = arith.constant 0 : i32
    %c0_i32_0 = arith.constant 0 : i32
    return %arg0, %c0_i32 : i32, i32
  }
  func.func @transform_1(%arg0: i32) -> (i32, i32) {
    %c0_i32 = arith.constant 0 : i32
    %c0_i32_0 = arith.constant 0 : i32
    return %arg0, %c0_i32 : i32, i32
  }
  func.func @transform_2(%arg0: i32) -> (i32, i32) {
    %c0_i32 = arith.constant 0 : i32
    %c0_i32_0 = arith.constant 0 : i32
    %c0_i32_1 = arith.constant 0 : i32
    return %c0_i32, %c0_i32_0 : i32, i32
  }
  func.func @transform_3(%arg0: i32) -> (i32, i32, i32) {
    %c0_i32 = arith.constant 0 : i32
    %c0_i32_0 = arith.constant 0 : i32
    %c0_i32_1 = arith.constant 0 : i32
    return %arg0, %c0_i32, %c0_i32_0 : i32, i32, i32
  }
}

</mosaic_0001>

<llo_original>
// kernel: tpu_custom_call.1
$region0: #{tpu_custom_call.1}
  #allocation0 [shape = 'u32[]', space=smem, size = 0x4, offset = 0x4, fixed_abs, tag = 'smem constant byte address 0x4 - core index']
  #allocation1 [shape = 'u32[144,128]{1,0:T(1,128)}', space=vmem, size = 0x12000, scoped, tag = 'internal scratch']
  %s0 = inlined_call_operand.hbm [shape: f32[2,128], index: 0, kind: input, shape index: {}]
  %s1 = inlined_call_operand.hbm [shape: f32[2,128], index: 1, kind: input, shape index: {}]
  %s2 = inlined_call_operand.hbm [shape: f32[128,4], index: 2, kind: input, shape index: {}]
  %s3 = inlined_call_operand.hbm [shape: f32[1,1,128], index: 3, kind: output, shape index: {}]
  %s4 = sld [smem:[#allocation0]]
  $region34: #{tpu_custom_call.1} parent=0
    _
  %s6 = ssub.s32 1, %s4
  %s7 = scalar_select 0, %s6, %s4
  $region1: #{tpu_custom_call.1} parent=0
    #allocation2 [shape = 'u8[1024]{0}', space=vmem, size = 0x400, scoped, tag = 'input window, operand 0, single buffered']
    #allocation3 [shape = 's32[1]{0}', space=sflag, size = 0x4, scoped, tag = 'scoped memory for tpu_custom_call.1']
    #allocation4 [shape = 's32[1]{0}', space=sflag, size = 0x4, scoped, tag = 'scoped memory for tpu_custom_call.1']
    #allocation5 [shape = 'u8[1024]{0}', space=vmem, size = 0x400, scoped, tag = 'input window, operand 1, single buffered']
    #allocation6 [shape = 's32[1]{0}', space=sflag, size = 0x4, scoped, tag = 'scoped memory for tpu_custom_call.1']
    #allocation7 [shape = 'u8[65536]{0}', space=vmem, size = 0x10000, scoped, tag = 'input window, operand 2, single buffered']
    #allocation8 [shape = 'u8[512]{0}', space=vmem, size = 0x400, scoped, tag = 'output window, operand 0, single buffered']
    %8 = vsyncpa [#allocation3], 0
    %9 = vsyncpa [#allocation6], 0
    %10 = vsyncpa [#allocation4], 0
    // Predicated region
    $region2: #{tpu_custom_call.1} parent=1 // pred_check
      _
    $region3: #{tpu_custom_call.1} parent=1 // pred_check_branch
      %12 = sbr.rel (0) target = $region5
    $region4: #{tpu_custom_call.1} parent=1 // pred_region
      %s14 = ssub.s32 32, 32
      %15 = vsyncadd [#allocation3], %s14
      %s17 = sshll.u32 [#allocation2], 4
      %s18 = int_to_ptr.vmem [resolvable:$true] %s17
      %20 = dma.hbm_to_vmem [thread:$0]  %s0, 32, %s18, [#allocation3]
    $region5: #{tpu_custom_call.1} parent=1 // pred_fallthru
      _
    // Predicated region
    $region6: #{tpu_custom_call.1} parent=1 // pred_check
      _
    $region7: #{tpu_custom_call.1} parent=1 // pred_check_branch
      %22 = sbr.rel (0) target = $region9
    $region8: #{tpu_custom_call.1} parent=1 // pred_region
      %s24 = ssub.s32 32, 32
      %25 = vsyncadd [#allocation6], %s24
      %s27 = sshll.u32 [#allocation5], 4
      %s28 = int_to_ptr.vmem [resolvable:$true] %s27
      %30 = dma.hbm_to_vmem [thread:$0]  %s1, 32, %s28, [#allocation6]
    $region9: #{tpu_custom_call.1} parent=1 // pred_fallthru
      _
    // Predicated region
    $region10: #{tpu_custom_call.1} parent=1 // pred_check
      _
    $region11: #{tpu_custom_call.1} parent=1 // pred_check_branch
      %32 = sbr.rel (0) target = $region13
    $region12: #{tpu_custom_call.1} parent=1 // pred_region
      %s34 = ssub.s32 2048, 2048
      %35 = vsyncadd [#allocation6], %s34
      %s36 = sshll.u32 [#allocation7], 4
      %s37 = int_to_ptr.vmem [resolvable:$true] %s36
      %42 = dma.hbm_to_vmem [thread:$0]  %s2, 2048, %s37, [#allocation6], 128, 128, 8
    $region13: #{tpu_custom_call.1} parent=1 // pred_fallthru
      _
    // Predicated region
    $region14: #{tpu_custom_call.1} parent=1 // pred_check
      _
    $region15: #{tpu_custom_call.1} parent=1 // pred_check_branch
      %44 = sbr.rel (0) target = $region17
    $region16: #{tpu_custom_call.1} parent=1 // pred_region
      %45 = dma.done [#allocation3], 32
    $region17: #{tpu_custom_call.1} parent=1 // pred_fallthru
      _
    // Predicated region
    $region18: #{tpu_custom_call.1} parent=1 // pred_check
      _
    $region19: #{tpu_custom_call.1} parent=1 // pred_check_branch
      %47 = sbr.rel (0) target = $region21
    $region20: #{tpu_custom_call.1} parent=1 // pred_region
      %48 = dma.done [#allocation6], 32
    $region21: #{tpu_custom_call.1} parent=1 // pred_fallthru
      _
    // Predicated region
    $region22: #{tpu_custom_call.1} parent=1 // pred_check
      _
    $region23: #{tpu_custom_call.1} parent=1 // pred_check_branch
      %50 = sbr.rel (0) target = $region25
    $region24: #{tpu_custom_call.1} parent=1 // pred_region
      %51 = dma.done [#allocation6], 2048
    $region25: #{tpu_custom_call.1} parent=1 // pred_fallthru
      _
    %v52 = vld [vmem:[#allocation2] sm:$0x3]
    %v53 = vld [vmem:[#allocation5] sm:$0x3]
    %v54 = vmul.f32 %v52, %v53
    %v55 = vmul.f32 %v52, %v52
    %v56 = vmul.f32 %v53, %v53
    %v57 = vld [vmem:[#allocation7] sm:$0xff]
    %v58 = vld [vmem:[#allocation7 + $0x8] sm:$0xff]
    %v59 = vld [vmem:[#allocation7 + $0x10] sm:$0xff]
    %v60 = vld [vmem:[#allocation7 + $0x18] sm:$0xff]
    %v61 = vld [vmem:[#allocation7 + $0x20] sm:$0xff]
    %v62 = vld [vmem:[#allocation7 + $0x28] sm:$0xff]
    %v63 = vld [vmem:[#allocation7 + $0x30] sm:$0xff]
    %v64 = vld [vmem:[#allocation7 + $0x38] sm:$0xff]
    %v65 = vld [vmem:[#allocation7 + $0x40] sm:$0xff]
    %v66 = vld [vmem:[#allocation7 + $0x48] sm:$0xff]
    %v67 = vld [vmem:[#allocation7 + $0x50] sm:$0xff]
    %v68 = vld [vmem:[#allocation7 + $0x58] sm:$0xff]
    %v69 = vld [vmem:[#allocation7 + $0x60] sm:$0xff]
    %v70 = vld [vmem:[#allocation7 + $0x68] sm:$0xff]
    %v71 = vld [vmem:[#allocation7 + $0x70] sm:$0xff]
    %v72 = vld [vmem:[#allocation7 + $0x78] sm:$0xff]
    %73 = vmatprep.subr.mxu0 0.0
    %74 = vmatpush1.msra.mxu0 %v57
    %75 = vmatprep.subr.mxu0 0.0
    %76 = vmatpush1.msra.mxu0 %v58
    %77 = vmatprep.subr.mxu0 0.0
    %78 = vmatpush1.msra.mxu0 %v59
    %79 = vmatprep.subr.mxu0 0.0
    %80 = vmatpush1.msra.mxu0 %v60
    %81 = vmatprep.subr.mxu0 0.0
    %82 = vmatpush1.msra.mxu0 %v61
    %83 = vmatprep.subr.mxu0 0.0
    %84 = vmatpush1.msra.mxu0 %v62
    %85 = vmatprep.subr.mxu0 0.0
    %86 = vmatpush1.msra.mxu0 %v63
    %87 = vmatprep.subr.mxu0 0.0
    %88 = vmatpush1.msra.mxu0 %v64
    %89 = vmatprep.subr.mxu0 0.0
    %90 = vmatpush1.msra.mxu0 %v65
    %91 = vmatprep.subr.mxu0 0.0
    %92 = vmatpush1.msra.mxu0 %v66
    %93 = vmatprep.subr.mxu0 0.0
    %94 = vmatpush1.msra.mxu0 %v67
    %95 = vmatprep.subr.mxu0 0.0
    %96 = vmatpush1.msra.mxu0 %v68
    %97 = vmatprep.subr.mxu0 0.0
    %98 = vmatpush1.msra.mxu0 %v69
    %99 = vmatprep.subr.mxu0 0.0
    %100 = vmatpush1.msra.mxu0 %v70
    %101 = vmatprep.subr.mxu0 0.0
    %102 = vmatpush1.msra.mxu0 %v71
    %103 = vmatprep.subr.mxu0 0.0
    %104 = vmatpush1.msra.mxu0 %v72
    %105 = vmatprep.subr.mxu0 0.0
    %106 = vmatpush1.msra.mxu0 0.0
    %107 = vmatprep.subr.mxu0 0.0
    %108 = vmatpush1.msra.mxu0 0.0
    %109 = vmatprep.subr.mxu0 0.0
    %110 = vmatpush1.msra.mxu0 0.0
    %111 = vmatprep.subr.mxu0 0.0
    %112 = vmatpush1.msra.mxu0 0.0
    %113 = vmatprep.subr.mxu0 0.0
    %114 = vmatpush1.msra.mxu0 0.0
    %115 = vmatprep.subr.mxu0 0.0
    %116 = vmatpush1.msra.mxu0 0.0
    %117 = vmatprep.subr.mxu0 0.0
    %118 = vmatpush1.msra.mxu0 0.0
    %119 = vmatprep.subr.mxu0 0.0
    %120 = vmatpush1.msra.mxu0 0.0
    %121 = vmatprep.subr.mxu0 0.0
    %122 = vmatpush1.msra.mxu0 0.0
    %123 = vmatprep.subr.mxu0 0.0
    %124 = vmatpush1.msra.mxu0 0.0
    %125 = vmatprep.subr.mxu0 0.0
    %126 = vmatpush1.msra.mxu0 0.0
    %127 = vmatprep.subr.mxu0 0.0
    %128 = vmatpush1.msra.mxu0 0.0
    %129 = vmatprep.subr.mxu0 0.0
    %130 = vmatpush1.msra.mxu0 0.0
    %131 = vmatprep.subr.mxu0 0.0
    %132 = vmatpush1.msra.mxu0 0.0
    %133 = vmatprep.subr.mxu0 0.0
    %134 = vmatpush1.msra.mxu0 0.0
    %135 = vmatprep.subr.mxu0 0.0
    %136 = vmatpush1.msra.mxu0 0.0
    %137 = vmatprep.mubr.f32.mxu0 0.0
    %138 = vmatmul.mubr.f32.gmra.mrb[0].mxu0 %v54
    %v139 = vpop.f32.mrb[0].mxu0
    %v140 = vadd.f32 0.0, %v139
    %v141 = vpop.f32.mrb[0].mxu0
    %142 = vdwg.mxu0
    %143 = vmatprep.subr.mxu0 0.0
    %144 = vmatpush1.msra.mxu0 %v57
    %145 = vmatprep.subr.mxu0 0.0
    %146 = vmatpush1.msra.mxu0 %v58
    %147 = vmatprep.subr.mxu0 0.0
    %148 = vmatpush1.msra.mxu0 %v59
    %149 = vmatprep.subr.mxu0 0.0
    %150 = vmatpush1.msra.mxu0 %v60
    %151 = vmatprep.subr.mxu0 0.0
    %152 = vmatpush1.msra.mxu0 %v61
    %153 = vmatprep.subr.mxu0 0.0
    %154 = vmatpush1.msra.mxu0 %v62
    %155 = vmatprep.subr.mxu0 0.0
    %156 = vmatpush1.msra.mxu0 %v63
    %157 = vmatprep.subr.mxu0 0.0
    %158 = vmatpush1.msra.mxu0 %v64
    %159 = vmatprep.subr.mxu0 0.0
    %160 = vmatpush1.msra.mxu0 %v65
    %161 = vmatprep.subr.mxu0 0.0
    %162 = vmatpush1.msra.mxu0 %v66
    %163 = vmatprep.subr.mxu0 0.0
    %164 = vmatpush1.msra.mxu0 %v67
    %165 = vmatprep.subr.mxu0 0.0
    %166 = vmatpush1.msra.mxu0 %v68
    %167 = vmatprep.subr.mxu0 0.0
    %168 = vmatpush1.msra.mxu0 %v69
    %169 = vmatprep.subr.mxu0 0.0
    %170 = vmatpush1.msra.mxu0 %v70
    %171 = vmatprep.subr.mxu0 0.0
    %172 = vmatpush1.msra.mxu0 %v71
    %173 = vmatprep.subr.mxu0 0.0
    %174 = vmatpush1.msra.mxu0 %v72
    %175 = vmatprep.subr.mxu0 0.0
    %176 = vmatpush1.msra.mxu0 0.0
    %177 = vmatprep.subr.mxu0 0.0
    %178 = vmatpush1.msra.mxu0 0.0
    %179 = vmatprep.subr.mxu0 0.0
    %180 = vmatpush1.msra.mxu0 0.0
    %181 = vmatprep.subr.mxu0 0.0
    %182 = vmatpush1.msra.mxu0 0.0
    %183 = vmatprep.subr.mxu0 0.0
    %184 = vmatpush1.msra.mxu0 0.0
    %185 = vmatprep.subr.mxu0 0.0
    %186 = vmatpush1.msra.mxu0 0.0
    %187 = vmatprep.subr.mxu0 0.0
    %188 = vmatpush1.msra.mxu0 0.0
    %189 = vmatprep.subr.mxu0 0.0
    %190 = vmatpush1.msra.mxu0 0.0
    %191 = vmatprep.subr.mxu0 0.0
    %192 = vmatpush1.msra.mxu0 0.0
    %193 = vmatprep.subr.mxu0 0.0
    %194 = vmatpush1.msra.mxu0 0.0
    %195 = vmatprep.subr.mxu0 0.0
    %196 = vmatpush1.msra.mxu0 0.0
    %197 = vmatprep.subr.mxu0 0.0
    %198 = vmatpush1.msra.mxu0 0.0
    %199 = vmatprep.subr.mxu0 0.0
    %200 = vmatpush1.msra.mxu0 0.0
    %201 = vmatprep.subr.mxu0 0.0
    %202 = vmatpush1.msra.mxu0 0.0
    %203 = vmatprep.subr.mxu0 0.0
    %204 = vmatpush1.msra.mxu0 0.0
    %205 = vmatprep.subr.mxu0 0.0
    %206 = vmatpush1.msra.mxu0 0.0
    %207 = vmatprep.mubr.f32.mxu0 0.0
    %208 = vmatmul.mubr.f32.gmra.mrb[0].mxu0 %v55
    %v209 = vpop.f32.mrb[0].mxu0
    %v210 = vadd.f32 0.0, %v209
    %v211 = vpop.f32.mrb[0].mxu0
    %212 = vdwg.mxu0
    %213 = vmatprep.subr.mxu0 0.0
    %214 = vmatpush1.msra.mxu0 %v57
    %215 = vmatprep.subr.mxu0 0.0
    %216 = vmatpush1.msra.mxu0 %v58
    %217 = vmatprep.subr.mxu0 0.0
    %218 = vmatpush1.msra.mxu0 %v59
    %219 = vmatprep.subr.mxu0 0.0
    %220 = vmatpush1.msra.mxu0 %v60
    %221 = vmatprep.subr.mxu0 0.0
    %222 = vmatpush1.msra.mxu0 %v61
    %223 = vmatprep.subr.mxu0 0.0
    %224 = vmatpush1.msra.mxu0 %v62
    %225 = vmatprep.subr.mxu0 0.0
    %226 = vmatpush1.msra.mxu0 %v63
    %227 = vmatprep.subr.mxu0 0.0
    %228 = vmatpush1.msra.mxu0 %v64
    %229 = vmatprep.subr.mxu0 0.0
    %230 = vmatpush1.msra.mxu0 %v65
    %231 = vmatprep.subr.mxu0 0.0
    %232 = vmatpush1.msra.mxu0 %v66
    %233 = vmatprep.subr.mxu0 0.0
    %234 = vmatpush1.msra.mxu0 %v67
    %235 = vmatprep.subr.mxu0 0.0
    %236 = vmatpush1.msra.mxu0 %v68
    %237 = vmatprep.subr.mxu0 0.0
    %238 = vmatpush1.msra.mxu0 %v69
    %239 = vmatprep.subr.mxu0 0.0
    %240 = vmatpush1.msra.mxu0 %v70
    %241 = vmatprep.subr.mxu0 0.0
    %242 = vmatpush1.msra.mxu0 %v71
    %243 = vmatprep.subr.mxu0 0.0
    %244 = vmatpush1.msra.mxu0 %v72
    %245 = vmatprep.subr.mxu0 0.0
    %246 = vmatpush1.msra.mxu0 0.0
    %247 = vmatprep.subr.mxu0 0.0
    %248 = vmatpush1.msra.mxu0 0.0
    %249 = vmatprep.subr.mxu0 0.0
    %250 = vmatpush1.msra.mxu0 0.0
    %251 = vmatprep.subr.mxu0 0.0
    %252 = vmatpush1.msra.mxu0 0.0
    %253 = vmatprep.subr.mxu0 0.0
    %254 = vmatpush1.msra.mxu0 0.0
    %255 = vmatprep.subr.mxu0 0.0
    %256 = vmatpush1.msra.mxu0 0.0
    %257 = vmatprep.subr.mxu0 0.0
    %258 = vmatpush1.msra.mxu0 0.0
    %259 = vmatprep.subr.mxu0 0.0
    %260 = vmatpush1.msra.mxu0 0.0
    %261 = vmatprep.subr.mxu0 0.0
    %262 = vmatpush1.msra.mxu0 0.0
    %263 = vmatprep.subr.mxu0 0.0
    %264 = vmatpush1.msra.mxu0 0.0
    %265 = vmatprep.subr.mxu0 0.0
    %266 = vmatpush1.msra.mxu0 0.0
    %267 = vmatprep.subr.mxu0 0.0
    %268 = vmatpush1.msra.mxu0 0.0
    %269 = vmatprep.subr.mxu0 0.0
    %270 = vmatpush1.msra.mxu0 0.0
    %271 = vmatprep.subr.mxu0 0.0
    %272 = vmatpush1.msra.mxu0 0.0
    %273 = vmatprep.subr.mxu0 0.0
    %274 = vmatpush1.msra.mxu0 0.0
    %275 = vmatprep.subr.mxu0 0.0
    %276 = vmatpush1.msra.mxu0 0.0
    %277 = vmatprep.mubr.f32.mxu0 0.0
    %278 = vmatmul.mubr.f32.gmra.mrb[0].mxu0 %v56
    %v279 = vpop.f32.mrb[0].mxu0
    %v280 = vadd.f32 0.0, %v279
    %v281 = vpop.f32.mrb[0].mxu0
    %282 = vdwg.mxu0
    %v283 = vmul.f32 %v210, %v280
    %v284 = vmax.f32 %v283, 1e-16
    %v285 = vrsqrt.pop %v284
    %v286 = vmul.f32 %v140, %v285
    %v287 = vsub.f32 1.0, %v286
    %vm288 = vcmp.lt.f32.partialorder %v287, 0.7
    %v289 = vsel %vm288, 0.0, %v287
    %v290 = vlaneseq
    %v291 = vshrl.u32 %v290, 7
    %v292 = vlaneseq
    %v293 = vand.u32 %v292, 127
    %s294 = smul.u32 0, 2
    %v295 = vstv %s294
    %v296 = vadd.s32 %v295, %v291
    %v297 = vmul.u32 %v296, 4
    %v298 = vadd.s32 %v297, %v293
    %vm299 = vcmp.lt.s32.totalorder %v298, 8
    %v300 = vsel %vm299, %v289, 0.0
    %vm301 = vcmask 25600
    %v302 = vsel %vm301, %v300, 0.0
    %303 = vadd.xlane.f32.xlu0 %v302
    %v304 = vpop.xlane.xlu0 %303
    %v305 = vrot.slane %v304, 4
    %v306 = vadd.f32 %v304, %v305
    %v307 = vrot.slane %v306, 2
    %v308 = vadd.f32 %v306, %v307
    %v309 = vrot.slane %v308, 1
    %v310 = vadd.f32 %v308, %v309
    %s311 = vtos %v310
    %v312 = vstv %s311
    %313 = vst [vmem:[#allocation8] sm:$0x1] %v312
    // Predicated region
    $region26: #{tpu_custom_call.1} parent=1 // pred_check
      _
    $region27: #{tpu_custom_call.1} parent=1 // pred_check_branch
      %315 = sbr.rel (0) target = $region29
    $region28: #{tpu_custom_call.1} parent=1 // pred_region
      %s317 = ssub.s32 16, 16
      %318 = vsyncadd [#allocation4], %s317
      %s320 = sshll.u32 [#allocation8], 4
      %s321 = int_to_ptr.vmem [resolvable:$true] %s320
      %323 = dma.vmem_to_hbm [thread:$0]  %s321, 16, %s3, [#allocation4]
    $region29: #{tpu_custom_call.1} parent=1 // pred_fallthru
      _
    // Predicated region
    $region30: #{tpu_custom_call.1} parent=1 // pred_check
      _
    $region31: #{tpu_custom_call.1} parent=1 // pred_check_branch
      %325 = sbr.rel (0) target = $region33
    $region32: #{tpu_custom_call.1} parent=1 // pred_region
      %326 = dma.done [#allocation4], 16
    $region33: #{tpu_custom_call.1} parent=1 // pred_fallthru
      _
    %327 = vsyncpa [#allocation3], 1
    %328 = vsyncpa [#allocation6], 1
    %329 = vsyncpa [#allocation4], 1

</llo_original>
